<compile_context>
chip_gen: v6e
topology: v6e:2x2x1
jax: 0.10.0
libtpu: 0.0.40
codegen_flags: <defaults>
</compile_context>

<pallas_src>
import functools

import jax
import jax.numpy as jnp
import numpy as np
from jax.experimental import pallas as pl
from jax.experimental.pallas import tpu as pltpu


# ----------------------------- Pallas kernel --------------------------------
def _critic_kernel(x_ref, w_ref, out_ref, *, N, H, G, H2, TB):
    # x_ref : (TB, N, 3) conforms tile for this grid step
    # w_ref : (R, 128)   packed weight slab (resident across all steps)
    # out   : (TB, 1)    per-sample value
    x = x_ref[...].astype(jnp.float32)                       # (TB, N, 3)

    # ---- static 2-D views into the packed weight slab ----------------------
    w_exi = w_ref[0:3, 0:H]                                  # (3, H)
    w_exj = w_ref[3:6, 0:H]                                  # (3, H)
    w_ed = w_ref[6:7, 0:H]                                   # (1, H)
    b_e = w_ref[7:8, 0:H]                                    # (1, H)
    w_nx = w_ref[8:11, 0:H]                                  # (3, H)
    b_n = w_ref[11:12, 0:H]                                  # (1, H)
    b_g = w_ref[12:13, 0:G]                                  # (1, G)
    b_m1 = w_ref[13:14, 0:H2]                                # (1, H2)
    w_m2r = w_ref[14:15, 0:H2]                               # (1, H2) row form
    b_m2 = w_ref[15:16, 0:1]                                 # (1, 1)
    w_na = w_ref[16:16 + H, 0:H]                             # (H, H)
    w_g = w_ref[16 + H:16 + 2 * H, 0:G]                      # (H, G)
    w_m1 = w_ref[16 + 2 * H:16 + 2 * H + G, 0:H2]            # (G, H2)

    # ---- coordinate planes (sliced once; tiny tensors) ----------------------
    x0 = x[:, :, 0:1]                                        # (TB, N, 1)
    x1 = x[:, :, 1:2]
    x2 = x[:, :, 2:3]

    # ---- K=3 input "matmuls" as three VPU FMAs (skip the MXU) --------------
    def fma3(w):  # w: (3, H) -> (TB, N, H)
        return (x0 * w[0:1, :][None]
                + x1 * w[1:2, :][None]
                + x2 * w[2:3, :][None])

    hi_pb = fma3(w_exi) + b_e[None]                          # b_e folded in
    hj = fma3(w_exj)                                         # (TB, N, H)
    w_ed_b = w_ed[None]                                      # (1, 1, H), hoisted

    # ---- edge + aggregation: unrolled over j, no (TB,N,N,H) materialization,
    #      per-coordinate distances (pure VPU + EUP sqrt, no XLU reduces) -----
    agg = jnp.zeros((TB, N, H), jnp.float32)
    for j in range(N):                                       # N == 8: short static unroll
        dx = x0 - x0[:, j:j + 1, :]                          # (TB, N, 1)
        dy = x1 - x1[:, j:j + 1, :]
        dz = x2 - x2[:, j:j + 1, :]
        dist_j = jnp.sqrt(dx * dx + dy * dy + dz * dz)       # (TB, N, 1)
        agg = agg + jnp.maximum(
            hi_pb + hj[:, j:j + 1, :] + dist_j * w_ed_b, 0.0)

    # ---- node model: ReLU([x_i, agg_i] @ W_n + b_n) -------------------------
    # N is a multiple of 8 here, so this reshape is a free view.
    node_lin = fma3(w_nx) + jnp.dot(
        agg.reshape(TB * N, H), w_na,
        preferred_element_type=jnp.float32).reshape(TB, N, H)
    node = jnp.maximum(node_lin + b_n[None], 0.0)            # (TB, N, H)

    # ---- global model: ReLU(mean_i node_i @ W_g + b_g) ----------------------
    g_in = jnp.mean(node, axis=1)                            # (TB, H)
    global_attr = jnp.maximum(
        jnp.dot(g_in, w_g, preferred_element_type=jnp.float32) + b_g, 0.0
    )                                                        # (TB, G)

    # ---- value MLP (no activation on last layer) ----------------------------
    h1 = jnp.maximum(
        jnp.dot(global_attr, w_m1, preferred_element_type=jnp.float32) + b_m1,
        0.0,
    )                                                        # (TB, H2)
    val = jnp.sum(h1 * w_m2r, axis=-1, keepdims=True) + b_m2  # (TB, 1)

    out_ref[...] = val.astype(out_ref.dtype)


# ------------------------------ wrapper --------------------------------------
def critic_forward(conforms, params, *, num_steps=None):
    """conforms: (B, N, 3) f32  ->  value: (B, 1) f32"""
    conforms = jnp.asarray(conforms, jnp.float32)
    B, N, _ = conforms.shape
    H = params["w_na"].shape[0]
    G = params["w_g"].shape[1]
    H2 = params["w_m1"].shape[1]

    # ---- batch tiling heuristic ---------------------------------------------
    if num_steps is None:
        # Per-sample VMEM working set (f32): ~8 live (N, H) feature tensors +
        # small (N, *) temps.  (The (N, N, H) edge tensor is no longer
        # materialized, so the old factor-of-3 estimate is obsolete.)
        per_sample_bytes = (8 * N * H + 16 * N) * 4
        budget_bytes = 12 << 20           # fits v7x's 64 MiB VMEM with headroom
        tb_cap = max(8, budget_bytes // per_sample_bytes)
        num_steps = pl.cdiv(B, tb_cap)
        # Split into 2 steps only when each TensorCore (v7x) gets >= ~32
        # samples of real work; on single-TC v5e/v6e the default stays 1 step.
        if num_steps == 1 and B >= 64:
            num_steps = 2
        # When splitting, keep the step count even so both v7x TCs get equal blocks.
        if num_steps > 1 and num_steps % 2 != 0:
            num_steps += 1

    if num_steps == 1:
        TB = B                            # block == full array dims
    else:
        TB = -(-pl.cdiv(B, num_steps) // 8) * 8   # multiple of 8
    B_pad = TB * num_steps
    if B_pad != B:
        conforms = jnp.concatenate(
            [conforms, jnp.zeros((B_pad - B, N, 3), jnp.float32)], axis=0)

    # ---- pack all weights/biases into one lane-padded (R, 128) slab ---------
    R = -(-(16 + 2 * H + G) // 8) * 8
    slab = jnp.zeros((R, 128), jnp.float32)
    slab = slab.at[0:3, 0:H].set(params["w_exi"])
    slab = slab.at[3:6, 0:H].set(params["w_exj"])
    slab = slab.at[6:7, 0:H].set(params["w_ed"])
    slab = slab.at[7:8, 0:H].set(params["b_e"])
    slab = slab.at[8:11, 0:H].set(params["w_nx"])
    slab = slab.at[11:12, 0:H].set(params["b_n"])
    slab = slab.at[12:13, 0:G].set(params["b_g"])
    slab = slab.at[13:14, 0:H2].set(params["b_m1"])
    slab = slab.at[14:15, 0:H2].set(params["w_m2"].T)
    slab = slab.at[15:16, 0:1].set(params["b_m2"])
    slab = slab.at[16:16 + H, 0:H].set(params["w_na"])
    slab = slab.at[16 + H:16 + 2 * H, 0:G].set(params["w_g"])
    slab = slab.at[16 + 2 * H:16 + 2 * H + G, 0:H2].set(params["w_m1"])

    kernel = functools.partial(_critic_kernel, N=N, H=H, G=G, H2=H2, TB=TB)

    flops_per_sample = (
        18 * N * H                    # input FMAs (hi, hj, node-x)
        + N * (8 * N + 6 * N * H)     # per-j distance + edge accumulate
        + 2 * N * H * H               # node matmul
        + 2 * H * G + 2 * G * H2 + 2 * H2 + 4 * N * H)
    cost = pl.CostEstimate(
        flops=int(B_pad * flops_per_sample),
        transcendentals=int(B_pad * N * N),
        bytes_accessed=int(B_pad * N * 3 * 4 + slab.size * 4 + B_pad * 4),
    )

    out = pl.pallas_call(
        kernel,
        out_shape=jax.ShapeDtypeStruct((B_pad, 1), jnp.float32),
        grid_spec=pltpu.PrefetchScalarGridSpec(
            num_scalar_prefetch=0,
            grid=(num_steps,),
            in_specs=[
                pl.BlockSpec((TB, N, 3), lambda b: (b, 0, 0)),
                pl.BlockSpec((R, 128), lambda b: (0, 0)),   # weights resident
            ],
            out_specs=pl.BlockSpec((TB, 1), lambda b: (b, 0)),
        ),
        compiler_params=pltpu.CompilerParams(
            dimension_semantics=("parallel",),
            vmem_limit_bytes=32 << 20),
        cost_estimate=cost,
    )(conforms, slab)

    return out[:B]


# ------------------------- deterministic params -------------------------------
def xavier_uniform(key, fan_in, fan_out):
    limit = float(np.sqrt(6.0 / (fan_in + fan_out)))
    return jax.random.uniform(
        key, (fan_in, fan_out), jnp.float32, minval=-limit, maxval=limit)


def init_params(key, H=32, G=32, H2=32):
    ks = jax.random.split(key, 8)
    # edge Linear over concat([x_i(3), x_j(3), dist(1)]) -> H : split columns
    w_e = xavier_uniform(ks[0], 7, H)
    params = {
        "w_exi": w_e[0:3, :],
        "w_exj": w_e[3:6, :],
        "w_ed": w_e[6:7, :],
        "b_e": jnp.zeros((1, H), jnp.float32),
    }
    # node Linear over concat([x_i(3), agg(H)]) -> H : split columns
    w_n = xavier_uniform(ks[1], 3 + H, H)
    params["w_nx"] = w_n[0:3, :]
    params["w_na"] = w_n[3:, :]
    params["b_n"] = jnp.zeros((1, H), jnp.float32)
    # global Linear H -> G
    params["w_g"] = xavier_uniform(ks[2], H, G)
    params["b_g"] = jnp.zeros((1, G), jnp.float32)
    # value MLP (MLPwoLastAct): G -> H2 -> 1
    params["w_m1"] = xavier_uniform(ks[3], G, H2)
    params["b_m1"] = jnp.zeros((1, H2), jnp.float32)
    params["w_m2"] = xavier_uniform(ks[4], H2, 1)
    params["b_m2"] = jnp.zeros((1, 1), jnp.float32)
    return params


# ------------------------- pure-JAX reference ---------------------------------
def critic_reference(conforms, p):
    def one(x):  # x: (N, 3)
        diff = x[:, None, :] - x[None, :, :]
        dist = jnp.sqrt(jnp.sum(diff * diff, axis=-1))
        edge = jax.nn.relu(
            (x @ p["w_exi"])[:, None, :]
            + (x @ p["w_exj"])[None, :, :]
            + dist[:, :, None] * p["w_ed"][0][None, None, :]
            + p["b_e"][0][None, None, :])
        agg = jnp.sum(edge, axis=1)
        node = jax.nn.relu(x @ p["w_nx"] + agg @ p["w_na"] + p["b_n"][0])
        g_in = jnp.mean(node, axis=0, keepdims=True)
        g = jax.nn.relu(g_in @ p["w_g"] + p["b_g"])
        h = jax.nn.relu(g @ p["w_m1"] + p["b_m1"])
        return (h @ p["w_m2"] + p["b_m2"])[0]  # (1,)

    return jax.vmap(one)(conforms)


# ---------------------------------- main --------------------------------------
if __name__ == "__main__":
    key = jax.random.PRNGKey(0)
    k_x, k_p, k_x2, k_x3 = jax.random.split(key, 4)

    N = 8                                    # num_atoms
    params = init_params(k_p, H=32, G=32, H2=32)

    # batch of 2: single grid step (no per-step overhead on single-TC chips)
    conforms = jax.random.normal(k_x, (2, N, 3), jnp.float32)
    value = jax.block_until_ready(critic_forward(conforms, params))
    ref = critic_reference(conforms, params)
    np.testing.assert_allclose(np.asarray(value), np.asarray(ref),
                               rtol=1e-5, atol=1e-4)

    # batch of 5: still one step, odd batch, full-array blocks
    conforms5 = jax.random.normal(k_x2, (5, N, 3), jnp.float32)
    value5 = jax.block_until_ready(critic_forward(conforms5, params))
    ref5 = critic_reference(conforms5, params)
    np.testing.assert_allclose(np.asarray(value5), np.asarray(ref5),
                               rtol=1e-5, atol=1e-4)

    # batch of 200: exercises the 2-step split (v7x megacore path) + padding
    conforms200 = jax.random.normal(k_x3, (200, N, 3), jnp.float32)
    value200 = jax.block_until_ready(critic_forward(conforms200, params))
    ref200 = critic_reference(conforms200, params)
    np.testing.assert_allclose(np.asarray(value200), np.asarray(ref200),
                               rtol=1e-5, atol=2e-4)

    print("KERNEL_OK")
</pallas_src>

<mosaic_0001>
module attributes {stable_mosaic.version = 11 : i64} {
  func.func @_critic_kernel(%arg0: i32, %arg1: memref<2x8x3xf32, #tpu.memory_space<vmem>>, %arg2: memref<112x128xf32, #tpu.memory_space<vmem>>, %arg3: memref<2x1xf32, #tpu.memory_space<vmem>>) attributes {dimension_semantics = [#tpu.dimension_semantics<parallel>], iteration_bounds = array<i64: 1>, scalar_prefetch = 0 : i64, scratch_operands = 0 : i64, tpu.core_type = #tpu.core_type<tc>, window_params = [{transform_indices = @transform_0, window_bounds = array<i64: 2, 8, 3>}, {pipeline_mode = #tpu.pipeline_mode<synchronous>, transform_indices = @transform_1, window_bounds = array<i64: 112, 128>}, {transform_indices = @transform_2, window_bounds = array<i64: 2, 1>}]} {
    %c0 = arith.constant 0 : index
    %c0_0 = arith.constant 0 : index
    %c0_1 = arith.constant 0 : index
    %0 = vector.load %arg1[%c0, %c0_0, %c0_1] : memref<2x8x3xf32, #tpu.memory_space<vmem>>, vector<2x8x3xf32>
    %c0_2 = arith.constant 0 : index
    %c0_3 = arith.constant 0 : index
    %1 = vector.load %arg2[%c0_2, %c0_3] : memref<112x128xf32, #tpu.memory_space<vmem>>, vector<3x32xf32>
    %c3 = arith.constant 3 : index
    %c0_4 = arith.constant 0 : index
    %2 = vector.load %arg2[%c3, %c0_4] : memref<112x128xf32, #tpu.memory_space<vmem>>, vector<3x32xf32>
    %c6 = arith.constant 6 : index
    %c0_5 = arith.constant 0 : index
    %3 = vector.load %arg2[%c6, %c0_5] : memref<112x128xf32, #tpu.memory_space<vmem>>, vector<1x32xf32>
    %c7 = arith.constant 7 : index
    %c0_6 = arith.constant 0 : index
    %4 = vector.load %arg2[%c7, %c0_6] : memref<112x128xf32, #tpu.memory_space<vmem>>, vector<1x32xf32>
    %c8 = arith.constant 8 : index
    %c0_7 = arith.constant 0 : index
    %5 = vector.load %arg2[%c8, %c0_7] : memref<112x128xf32, #tpu.memory_space<vmem>>, vector<3x32xf32>
    %c11 = arith.constant 11 : index
    %c0_8 = arith.constant 0 : index
    %6 = vector.load %arg2[%c11, %c0_8] : memref<112x128xf32, #tpu.memory_space<vmem>>, vector<1x32xf32>
    %c12 = arith.constant 12 : index
    %c0_9 = arith.constant 0 : index
    %7 = vector.load %arg2[%c12, %c0_9] : memref<112x128xf32, #tpu.memory_space<vmem>>, vector<1x32xf32>
    %c13 = arith.constant 13 : index
    %c0_10 = arith.constant 0 : index
    %8 = vector.load %arg2[%c13, %c0_10] : memref<112x128xf32, #tpu.memory_space<vmem>>, vector<1x32xf32>
    %c14 = arith.constant 14 : index
    %c0_11 = arith.constant 0 : index
    %9 = vector.load %arg2[%c14, %c0_11] : memref<112x128xf32, #tpu.memory_space<vmem>>, vector<1x32xf32>
    %c15 = arith.constant 15 : index
    %c0_12 = arith.constant 0 : index
    %10 = vector.load %arg2[%c15, %c0_12] : memref<112x128xf32, #tpu.memory_space<vmem>>, vector<1x1xf32>
    %c16 = arith.constant 16 : index
    %c0_13 = arith.constant 0 : index
    %11 = vector.load %arg2[%c16, %c0_13] : memref<112x128xf32, #tpu.memory_space<vmem>>, vector<32x32xf32>
    %c48 = arith.constant 48 : index
    %c0_14 = arith.constant 0 : index
    %12 = vector.load %arg2[%c48, %c0_14] : memref<112x128xf32, #tpu.memory_space<vmem>>, vector<32x32xf32>
    %c80 = arith.constant 80 : index
    %c0_15 = arith.constant 0 : index
    %13 = vector.load %arg2[%c80, %c0_15] : memref<112x128xf32, #tpu.memory_space<vmem>>, vector<32x32xf32>
    %14 = vector.extract_strided_slice %0 {offsets = [0, 0, 0], sizes = [2, 8, 1], strides = [1, 1, 1]} : vector<2x8x3xf32> to vector<2x8x1xf32>
    %15 = vector.extract_strided_slice %0 {offsets = [0, 0, 1], sizes = [2, 8, 1], strides = [1, 1, 1]} : vector<2x8x3xf32> to vector<2x8x1xf32>
    %16 = vector.extract_strided_slice %0 {offsets = [0, 0, 2], sizes = [2, 8, 1], strides = [1, 1, 1]} : vector<2x8x3xf32> to vector<2x8x1xf32>
    %17 = vector.extract_strided_slice %1 {offsets = [0, 0], sizes = [1, 32], strides = [1, 1]} : vector<3x32xf32> to vector<1x32xf32>
    %18 = vector.shape_cast %17 : vector<1x32xf32> to vector<1x1x32xf32>
    %19 = vector.broadcast %14 : vector<2x8x1xf32> to vector<2x8x32xf32>
    %20 = vector.broadcast %18 : vector<1x1x32xf32> to vector<2x8x32xf32>
    %21 = arith.mulf %19, %20 : vector<2x8x32xf32>
    %22 = vector.extract_strided_slice %1 {offsets = [1, 0], sizes = [1, 32], strides = [1, 1]} : vector<3x32xf32> to vector<1x32xf32>
    %23 = vector.shape_cast %22 : vector<1x32xf32> to vector<1x1x32xf32>
    %24 = vector.broadcast %15 : vector<2x8x1xf32> to vector<2x8x32xf32>
    %25 = vector.broadcast %23 : vector<1x1x32xf32> to vector<2x8x32xf32>
    %26 = arith.mulf %24, %25 : vector<2x8x32xf32>
    %27 = arith.addf %21, %26 : vector<2x8x32xf32>
    %28 = vector.extract_strided_slice %1 {offsets = [2, 0], sizes = [1, 32], strides = [1, 1]} : vector<3x32xf32> to vector<1x32xf32>
    %29 = vector.shape_cast %28 : vector<1x32xf32> to vector<1x1x32xf32>
    %30 = vector.broadcast %16 : vector<2x8x1xf32> to vector<2x8x32xf32>
    %31 = vector.broadcast %29 : vector<1x1x32xf32> to vector<2x8x32xf32>
    %32 = arith.mulf %30, %31 : vector<2x8x32xf32>
    %33 = arith.addf %27, %32 : vector<2x8x32xf32>
    %34 = vector.shape_cast %4 : vector<1x32xf32> to vector<1x1x32xf32>
    %35 = vector.broadcast %34 : vector<1x1x32xf32> to vector<2x8x32xf32>
    %36 = arith.addf %33, %35 : vector<2x8x32xf32>
    %37 = vector.extract_strided_slice %2 {offsets = [0, 0], sizes = [1, 32], strides = [1, 1]} : vector<3x32xf32> to vector<1x32xf32>
    %38 = vector.shape_cast %37 : vector<1x32xf32> to vector<1x1x32xf32>
    %39 = vector.broadcast %14 : vector<2x8x1xf32> to vector<2x8x32xf32>
    %40 = vector.broadcast %38 : vector<1x1x32xf32> to vector<2x8x32xf32>
    %41 = arith.mulf %39, %40 : vector<2x8x32xf32>
    %42 = vector.extract_strided_slice %2 {offsets = [1, 0], sizes = [1, 32], strides = [1, 1]} : vector<3x32xf32> to vector<1x32xf32>
    %43 = vector.shape_cast %42 : vector<1x32xf32> to vector<1x1x32xf32>
    %44 = vector.broadcast %15 : vector<2x8x1xf32> to vector<2x8x32xf32>
    %45 = vector.broadcast %43 : vector<1x1x32xf32> to vector<2x8x32xf32>
    %46 = arith.mulf %44, %45 : vector<2x8x32xf32>
    %47 = arith.addf %41, %46 : vector<2x8x32xf32>
    %48 = vector.extract_strided_slice %2 {offsets = [2, 0], sizes = [1, 32], strides = [1, 1]} : vector<3x32xf32> to vector<1x32xf32>
    %49 = vector.shape_cast %48 : vector<1x32xf32> to vector<1x1x32xf32>
    %50 = vector.broadcast %16 : vector<2x8x1xf32> to vector<2x8x32xf32>
    %51 = vector.broadcast %49 : vector<1x1x32xf32> to vector<2x8x32xf32>
    %52 = arith.mulf %50, %51 : vector<2x8x32xf32>
    %53 = arith.addf %47, %52 : vector<2x8x32xf32>
    %54 = vector.shape_cast %3 : vector<1x32xf32> to vector<1x1x32xf32>
    %cst = arith.constant 0.000000e+00 : f32
    %55 = vector.broadcast %cst : f32 to vector<2x8x32xf32>
    %56 = vector.extract_strided_slice %14 {offsets = [0, 0, 0], sizes = [2, 1, 1], strides = [1, 1, 1]} : vector<2x8x1xf32> to vector<2x1x1xf32>
    %57 = vector.broadcast %56 : vector<2x1x1xf32> to vector<2x8x1xf32>
    %58 = arith.subf %14, %57 : vector<2x8x1xf32>
    %59 = vector.extract_strided_slice %15 {offsets = [0, 0, 0], sizes = [2, 1, 1], strides = [1, 1, 1]} : vector<2x8x1xf32> to vector<2x1x1xf32>
    %60 = vector.broadcast %59 : vector<2x1x1xf32> to vector<2x8x1xf32>
    %61 = arith.subf %15, %60 : vector<2x8x1xf32>
    %62 = vector.extract_strided_slice %16 {offsets = [0, 0, 0], sizes = [2, 1, 1], strides = [1, 1, 1]} : vector<2x8x1xf32> to vector<2x1x1xf32>
    %63 = vector.broadcast %62 : vector<2x1x1xf32> to vector<2x8x1xf32>
    %64 = arith.subf %16, %63 : vector<2x8x1xf32>
    %65 = arith.mulf %58, %58 : vector<2x8x1xf32>
    %66 = arith.mulf %61, %61 : vector<2x8x1xf32>
    %67 = arith.addf %65, %66 : vector<2x8x1xf32>
    %68 = arith.mulf %64, %64 : vector<2x8x1xf32>
    %69 = arith.addf %67, %68 : vector<2x8x1xf32>
    %70 = math.sqrt %69 : vector<2x8x1xf32>
    %71 = vector.extract_strided_slice %53 {offsets = [0, 0, 0], sizes = [2, 1, 32], strides = [1, 1, 1]} : vector<2x8x32xf32> to vector<2x1x32xf32>
    %72 = vector.broadcast %71 : vector<2x1x32xf32> to vector<2x8x32xf32>
    %73 = arith.addf %36, %72 : vector<2x8x32xf32>
    %74 = vector.broadcast %70 : vector<2x8x1xf32> to vector<2x8x32xf32>
    %75 = vector.broadcast %54 : vector<1x1x32xf32> to vector<2x8x32xf32>
    %76 = arith.mulf %74, %75 : vector<2x8x32xf32>
    %77 = arith.addf %73, %76 : vector<2x8x32xf32>
    %cst_16 = arith.constant 0.000000e+00 : f32
    %78 = vector.broadcast %cst_16 : f32 to vector<2x8x32xf32>
    %79 = arith.maximumf %77, %78 : vector<2x8x32xf32>
    %80 = arith.addf %55, %79 : vector<2x8x32xf32>
    %81 = vector.extract_strided_slice %14 {offsets = [0, 1, 0], sizes = [2, 1, 1], strides = [1, 1, 1]} : vector<2x8x1xf32> to vector<2x1x1xf32>
    %82 = vector.broadcast %81 : vector<2x1x1xf32> to vector<2x8x1xf32>
    %83 = arith.subf %14, %82 : vector<2x8x1xf32>
    %84 = vector.extract_strided_slice %15 {offsets = [0, 1, 0], sizes = [2, 1, 1], strides = [1, 1, 1]} : vector<2x8x1xf32> to vector<2x1x1xf32>
    %85 = vector.broadcast %84 : vector<2x1x1xf32> to vector<2x8x1xf32>
    %86 = arith.subf %15, %85 : vector<2x8x1xf32>
    %87 = vector.extract_strided_slice %16 {offsets = [0, 1, 0], sizes = [2, 1, 1], strides = [1, 1, 1]} : vector<2x8x1xf32> to vector<2x1x1xf32>
    %88 = vector.broadcast %87 : vector<2x1x1xf32> to vector<2x8x1xf32>
    %89 = arith.subf %16, %88 : vector<2x8x1xf32>
    %90 = arith.mulf %83, %83 : vector<2x8x1xf32>
    %91 = arith.mulf %86, %86 : vector<2x8x1xf32>
    %92 = arith.addf %90, %91 : vector<2x8x1xf32>
    %93 = arith.mulf %89, %89 : vector<2x8x1xf32>
    %94 = arith.addf %92, %93 : vector<2x8x1xf32>
    %95 = math.sqrt %94 : vector<2x8x1xf32>
    %96 = vector.extract_strided_slice %53 {offsets = [0, 1, 0], sizes = [2, 1, 32], strides = [1, 1, 1]} : vector<2x8x32xf32> to vector<2x1x32xf32>
    %97 = vector.broadcast %96 : vector<2x1x32xf32> to vector<2x8x32xf32>
    %98 = arith.addf %36, %97 : vector<2x8x32xf32>
    %99 = vector.broadcast %95 : vector<2x8x1xf32> to vector<2x8x32xf32>
    %100 = vector.broadcast %54 : vector<1x1x32xf32> to vector<2x8x32xf32>
    %101 = arith.mulf %99, %100 : vector<2x8x32xf32>
    %102 = arith.addf %98, %101 : vector<2x8x32xf32>
    %cst_17 = arith.constant 0.000000e+00 : f32
    %103 = vector.broadcast %cst_17 : f32 to vector<2x8x32xf32>
    %104 = arith.maximumf %102, %103 : vector<2x8x32xf32>
    %105 = arith.addf %80, %104 : vector<2x8x32xf32>
    %106 = vector.extract_strided_slice %14 {offsets = [0, 2, 0], sizes = [2, 1, 1], strides = [1, 1, 1]} : vector<2x8x1xf32> to vector<2x1x1xf32>
    %107 = vector.broadcast %106 : vector<2x1x1xf32> to vector<2x8x1xf32>
    %108 = arith.subf %14, %107 : vector<2x8x1xf32>
    %109 = vector.extract_strided_slice %15 {offsets = [0, 2, 0], sizes = [2, 1, 1], strides = [1, 1, 1]} : vector<2x8x1xf32> to vector<2x1x1xf32>
    %110 = vector.broadcast %109 : vector<2x1x1xf32> to vector<2x8x1xf32>
    %111 = arith.subf %15, %110 : vector<2x8x1xf32>
    %112 = vector.extract_strided_slice %16 {offsets = [0, 2, 0], sizes = [2, 1, 1], strides = [1, 1, 1]} : vector<2x8x1xf32> to vector<2x1x1xf32>
    %113 = vector.broadcast %112 : vector<2x1x1xf32> to vector<2x8x1xf32>
    %114 = arith.subf %16, %113 : vector<2x8x1xf32>
    %115 = arith.mulf %108, %108 : vector<2x8x1xf32>
    %116 = arith.mulf %111, %111 : vector<2x8x1xf32>
    %117 = arith.addf %115, %116 : vector<2x8x1xf32>
    %118 = arith.mulf %114, %114 : vector<2x8x1xf32>
    %119 = arith.addf %117, %118 : vector<2x8x1xf32>
    %120 = math.sqrt %119 : vector<2x8x1xf32>
    %121 = vector.extract_strided_slice %53 {offsets = [0, 2, 0], sizes = [2, 1, 32], strides = [1, 1, 1]} : vector<2x8x32xf32> to vector<2x1x32xf32>
    %122 = vector.broadcast %121 : vector<2x1x32xf32> to vector<2x8x32xf32>
    %123 = arith.addf %36, %122 : vector<2x8x32xf32>
    %124 = vector.broadcast %120 : vector<2x8x1xf32> to vector<2x8x32xf32>
    %125 = vector.broadcast %54 : vector<1x1x32xf32> to vector<2x8x32xf32>
    %126 = arith.mulf %124, %125 : vector<2x8x32xf32>
    %127 = arith.addf %123, %126 : vector<2x8x32xf32>
    %cst_18 = arith.constant 0.000000e+00 : f32
    %128 = vector.broadcast %cst_18 : f32 to vector<2x8x32xf32>
    %129 = arith.maximumf %127, %128 : vector<2x8x32xf32>
    %130 = arith.addf %105, %129 : vector<2x8x32xf32>
    %131 = vector.extract_strided_slice %14 {offsets = [0, 3, 0], sizes = [2, 1, 1], strides = [1, 1, 1]} : vector<2x8x1xf32> to vector<2x1x1xf32>
    %132 = vector.broadcast %131 : vector<2x1x1xf32> to vector<2x8x1xf32>
    %133 = arith.subf %14, %132 : vector<2x8x1xf32>
    %134 = vector.extract_strided_slice %15 {offsets = [0, 3, 0], sizes = [2, 1, 1], strides = [1, 1, 1]} : vector<2x8x1xf32> to vector<2x1x1xf32>
    %135 = vector.broadcast %134 : vector<2x1x1xf32> to vector<2x8x1xf32>
    %136 = arith.subf %15, %135 : vector<2x8x1xf32>
    %137 = vector.extract_strided_slice %16 {offsets = [0, 3, 0], sizes = [2, 1, 1], strides = [1, 1, 1]} : vector<2x8x1xf32> to vector<2x1x1xf32>
    %138 = vector.broadcast %137 : vector<2x1x1xf32> to vector<2x8x1xf32>
    %139 = arith.subf %16, %138 : vector<2x8x1xf32>
    %140 = arith.mulf %133, %133 : vector<2x8x1xf32>
    %141 = arith.mulf %136, %136 : vector<2x8x1xf32>
    %142 = arith.addf %140, %141 : vector<2x8x1xf32>
    %143 = arith.mulf %139, %139 : vector<2x8x1xf32>
    %144 = arith.addf %142, %143 : vector<2x8x1xf32>
    %145 = math.sqrt %144 : vector<2x8x1xf32>
    %146 = vector.extract_strided_slice %53 {offsets = [0, 3, 0], sizes = [2, 1, 32], strides = [1, 1, 1]} : vector<2x8x32xf32> to vector<2x1x32xf32>
    %147 = vector.broadcast %146 : vector<2x1x32xf32> to vector<2x8x32xf32>
    %148 = arith.addf %36, %147 : vector<2x8x32xf32>
    %149 = vector.broadcast %145 : vector<2x8x1xf32> to vector<2x8x32xf32>
    %150 = vector.broadcast %54 : vector<1x1x32xf32> to vector<2x8x32xf32>
    %151 = arith.mulf %149, %150 : vector<2x8x32xf32>
    %152 = arith.addf %148, %151 : vector<2x8x32xf32>
    %cst_19 = arith.constant 0.000000e+00 : f32
    %153 = vector.broadcast %cst_19 : f32 to vector<2x8x32xf32>
    %154 = arith.maximumf %152, %153 : vector<2x8x32xf32>
    %155 = arith.addf %130, %154 : vector<2x8x32xf32>
    %156 = vector.extract_strided_slice %14 {offsets = [0, 4, 0], sizes = [2, 1, 1], strides = [1, 1, 1]} : vector<2x8x1xf32> to vector<2x1x1xf32>
    %157 = vector.broadcast %156 : vector<2x1x1xf32> to vector<2x8x1xf32>
    %158 = arith.subf %14, %157 : vector<2x8x1xf32>
    %159 = vector.extract_strided_slice %15 {offsets = [0, 4, 0], sizes = [2, 1, 1], strides = [1, 1, 1]} : vector<2x8x1xf32> to vector<2x1x1xf32>
    %160 = vector.broadcast %159 : vector<2x1x1xf32> to vector<2x8x1xf32>
    %161 = arith.subf %15, %160 : vector<2x8x1xf32>
    %162 = vector.extract_strided_slice %16 {offsets = [0, 4, 0], sizes = [2, 1, 1], strides = [1, 1, 1]} : vector<2x8x1xf32> to vector<2x1x1xf32>
    %163 = vector.broadcast %162 : vector<2x1x1xf32> to vector<2x8x1xf32>
    %164 = arith.subf %16, %163 : vector<2x8x1xf32>
    %165 = arith.mulf %158, %158 : vector<2x8x1xf32>
    %166 = arith.mulf %161, %161 : vector<2x8x1xf32>
    %167 = arith.addf %165, %166 : vector<2x8x1xf32>
    %168 = arith.mulf %164, %164 : vector<2x8x1xf32>
    %169 = arith.addf %167, %168 : vector<2x8x1xf32>
    %170 = math.sqrt %169 : vector<2x8x1xf32>
    %171 = vector.extract_strided_slice %53 {offsets = [0, 4, 0], sizes = [2, 1, 32], strides = [1, 1, 1]} : vector<2x8x32xf32> to vector<2x1x32xf32>
    %172 = vector.broadcast %171 : vector<2x1x32xf32> to vector<2x8x32xf32>
    %173 = arith.addf %36, %172 : vector<2x8x32xf32>
    %174 = vector.broadcast %170 : vector<2x8x1xf32> to vector<2x8x32xf32>
    %175 = vector.broadcast %54 : vector<1x1x32xf32> to vector<2x8x32xf32>
    %176 = arith.mulf %174, %175 : vector<2x8x32xf32>
    %177 = arith.addf %173, %176 : vector<2x8x32xf32>
    %cst_20 = arith.constant 0.000000e+00 : f32
    %178 = vector.broadcast %cst_20 : f32 to vector<2x8x32xf32>
    %179 = arith.maximumf %177, %178 : vector<2x8x32xf32>
    %180 = arith.addf %155, %179 : vector<2x8x32xf32>
    %181 = vector.extract_strided_slice %14 {offsets = [0, 5, 0], sizes = [2, 1, 1], strides = [1, 1, 1]} : vector<2x8x1xf32> to vector<2x1x1xf32>
    %182 = vector.broadcast %181 : vector<2x1x1xf32> to vector<2x8x1xf32>
    %183 = arith.subf %14, %182 : vector<2x8x1xf32>
    %184 = vector.extract_strided_slice %15 {offsets = [0, 5, 0], sizes = [2, 1, 1], strides = [1, 1, 1]} : vector<2x8x1xf32> to vector<2x1x1xf32>
    %185 = vector.broadcast %184 : vector<2x1x1xf32> to vector<2x8x1xf32>
    %186 = arith.subf %15, %185 : vector<2x8x1xf32>
    %187 = vector.extract_strided_slice %16 {offsets = [0, 5, 0], sizes = [2, 1, 1], strides = [1, 1, 1]} : vector<2x8x1xf32> to vector<2x1x1xf32>
    %188 = vector.broadcast %187 : vector<2x1x1xf32> to vector<2x8x1xf32>
    %189 = arith.subf %16, %188 : vector<2x8x1xf32>
    %190 = arith.mulf %183, %183 : vector<2x8x1xf32>
    %191 = arith.mulf %186, %186 : vector<2x8x1xf32>
    %192 = arith.addf %190, %191 : vector<2x8x1xf32>
    %193 = arith.mulf %189, %189 : vector<2x8x1xf32>
    %194 = arith.addf %192, %193 : vector<2x8x1xf32>
    %195 = math.sqrt %194 : vector<2x8x1xf32>
    %196 = vector.extract_strided_slice %53 {offsets = [0, 5, 0], sizes = [2, 1, 32], strides = [1, 1, 1]} : vector<2x8x32xf32> to vector<2x1x32xf32>
    %197 = vector.broadcast %196 : vector<2x1x32xf32> to vector<2x8x32xf32>
    %198 = arith.addf %36, %197 : vector<2x8x32xf32>
    %199 = vector.broadcast %195 : vector<2x8x1xf32> to vector<2x8x32xf32>
    %200 = vector.broadcast %54 : vector<1x1x32xf32> to vector<2x8x32xf32>
    %201 = arith.mulf %199, %200 : vector<2x8x32xf32>
    %202 = arith.addf %198, %201 : vector<2x8x32xf32>
    %cst_21 = arith.constant 0.000000e+00 : f32
    %203 = vector.broadcast %cst_21 : f32 to vector<2x8x32xf32>
    %204 = arith.maximumf %202, %203 : vector<2x8x32xf32>
    %205 = arith.addf %180, %204 : vector<2x8x32xf32>
    %206 = vector.extract_strided_slice %14 {offsets = [0, 6, 0], sizes = [2, 1, 1], strides = [1, 1, 1]} : vector<2x8x1xf32> to vector<2x1x1xf32>
    %207 = vector.broadcast %206 : vector<2x1x1xf32> to vector<2x8x1xf32>
    %208 = arith.subf %14, %207 : vector<2x8x1xf32>
    %209 = vector.extract_strided_slice %15 {offsets = [0, 6, 0], sizes = [2, 1, 1], strides = [1, 1, 1]} : vector<2x8x1xf32> to vector<2x1x1xf32>
    %210 = vector.broadcast %209 : vector<2x1x1xf32> to vector<2x8x1xf32>
    %211 = arith.subf %15, %210 : vector<2x8x1xf32>
    %212 = vector.extract_strided_slice %16 {offsets = [0, 6, 0], sizes = [2, 1, 1], strides = [1, 1, 1]} : vector<2x8x1xf32> to vector<2x1x1xf32>
    %213 = vector.broadcast %212 : vector<2x1x1xf32> to vector<2x8x1xf32>
    %214 = arith.subf %16, %213 : vector<2x8x1xf32>
    %215 = arith.mulf %208, %208 : vector<2x8x1xf32>
    %216 = arith.mulf %211, %211 : vector<2x8x1xf32>
    %217 = arith.addf %215, %216 : vector<2x8x1xf32>
    %218 = arith.mulf %214, %214 : vector<2x8x1xf32>
    %219 = arith.addf %217, %218 : vector<2x8x1xf32>
    %220 = math.sqrt %219 : vector<2x8x1xf32>
    %221 = vector.extract_strided_slice %53 {offsets = [0, 6, 0], sizes = [2, 1, 32], strides = [1, 1, 1]} : vector<2x8x32xf32> to vector<2x1x32xf32>
    %222 = vector.broadcast %221 : vector<2x1x32xf32> to vector<2x8x32xf32>
    %223 = arith.addf %36, %222 : vector<2x8x32xf32>
    %224 = vector.broadcast %220 : vector<2x8x1xf32> to vector<2x8x32xf32>
    %225 = vector.broadcast %54 : vector<1x1x32xf32> to vector<2x8x32xf32>
    %226 = arith.mulf %224, %225 : vector<2x8x32xf32>
    %227 = arith.addf %223, %226 : vector<2x8x32xf32>
    %cst_22 = arith.constant 0.000000e+00 : f32
    %228 = vector.broadcast %cst_22 : f32 to vector<2x8x32xf32>
    %229 = arith.maximumf %227, %228 : vector<2x8x32xf32>
    %230 = arith.addf %205, %229 : vector<2x8x32xf32>
    %231 = vector.extract_strided_slice %14 {offsets = [0, 7, 0], sizes = [2, 1, 1], strides = [1, 1, 1]} : vector<2x8x1xf32> to vector<2x1x1xf32>
    %232 = vector.broadcast %231 : vector<2x1x1xf32> to vector<2x8x1xf32>
    %233 = arith.subf %14, %232 : vector<2x8x1xf32>
    %234 = vector.extract_strided_slice %15 {offsets = [0, 7, 0], sizes = [2, 1, 1], strides = [1, 1, 1]} : vector<2x8x1xf32> to vector<2x1x1xf32>
    %235 = vector.broadcast %234 : vector<2x1x1xf32> to vector<2x8x1xf32>
    %236 = arith.subf %15, %235 : vector<2x8x1xf32>
    %237 = vector.extract_strided_slice %16 {offsets = [0, 7, 0], sizes = [2, 1, 1], strides = [1, 1, 1]} : vector<2x8x1xf32> to vector<2x1x1xf32>
    %238 = vector.broadcast %237 : vector<2x1x1xf32> to vector<2x8x1xf32>
    %239 = arith.subf %16, %238 : vector<2x8x1xf32>
    %240 = arith.mulf %233, %233 : vector<2x8x1xf32>
    %241 = arith.mulf %236, %236 : vector<2x8x1xf32>
    %242 = arith.addf %240, %241 : vector<2x8x1xf32>
    %243 = arith.mulf %239, %239 : vector<2x8x1xf32>
    %244 = arith.addf %242, %243 : vector<2x8x1xf32>
    %245 = math.sqrt %244 : vector<2x8x1xf32>
    %246 = vector.extract_strided_slice %53 {offsets = [0, 7, 0], sizes = [2, 1, 32], strides = [1, 1, 1]} : vector<2x8x32xf32> to vector<2x1x32xf32>
    %247 = vector.broadcast %246 : vector<2x1x32xf32> to vector<2x8x32xf32>
    %248 = arith.addf %36, %247 : vector<2x8x32xf32>
    %249 = vector.broadcast %245 : vector<2x8x1xf32> to vector<2x8x32xf32>
    %250 = vector.broadcast %54 : vector<1x1x32xf32> to vector<2x8x32xf32>
    %251 = arith.mulf %249, %250 : vector<2x8x32xf32>
    %252 = arith.addf %248, %251 : vector<2x8x32xf32>
    %cst_23 = arith.constant 0.000000e+00 : f32
    %253 = vector.broadcast %cst_23 : f32 to vector<2x8x32xf32>
    %254 = arith.maximumf %252, %253 : vector<2x8x32xf32>
    %255 = arith.addf %230, %254 : vector<2x8x32xf32>
    %256 = vector.extract_strided_slice %5 {offsets = [0, 0], sizes = [1, 32], strides = [1, 1]} : vector<3x32xf32> to vector<1x32xf32>
    %257 = vector.shape_cast %256 : vector<1x32xf32> to vector<1x1x32xf32>
    %258 = vector.broadcast %14 : vector<2x8x1xf32> to vector<2x8x32xf32>
    %259 = vector.broadcast %257 : vector<1x1x32xf32> to vector<2x8x32xf32>
    %260 = arith.mulf %258, %259 : vector<2x8x32xf32>
    %261 = vector.extract_strided_slice %5 {offsets = [1, 0], sizes = [1, 32], strides = [1, 1]} : vector<3x32xf32> to vector<1x32xf32>
    %262 = vector.shape_cast %261 : vector<1x32xf32> to vector<1x1x32xf32>
    %263 = vector.broadcast %15 : vector<2x8x1xf32> to vector<2x8x32xf32>
    %264 = vector.broadcast %262 : vector<1x1x32xf32> to vector<2x8x32xf32>
    %265 = arith.mulf %263, %264 : vector<2x8x32xf32>
    %266 = arith.addf %260, %265 : vector<2x8x32xf32>
    %267 = vector.extract_strided_slice %5 {offsets = [2, 0], sizes = [1, 32], strides = [1, 1]} : vector<3x32xf32> to vector<1x32xf32>
    %268 = vector.shape_cast %267 : vector<1x32xf32> to vector<1x1x32xf32>
    %269 = vector.broadcast %16 : vector<2x8x1xf32> to vector<2x8x32xf32>
    %270 = vector.broadcast %268 : vector<1x1x32xf32> to vector<2x8x32xf32>
    %271 = arith.mulf %269, %270 : vector<2x8x32xf32>
    %272 = arith.addf %266, %271 : vector<2x8x32xf32>
    %273 = vector.shape_cast %255 : vector<2x8x32xf32> to vector<16x32xf32>
    %cst_24 = arith.constant dense<0.000000e+00> : vector<16x32xf32>
    %274 = tpu.matmul %273, %11, %cst_24 {dimension_numbers = #tpu.dot_dimension_numbers<[1], [0], [0], [1], [0, 0, 1, 1], [], []>} : vector<16x32xf32>, vector<32x32xf32>, vector<16x32xf32> -> vector<16x32xf32>
    %275 = vector.shape_cast %274 : vector<16x32xf32> to vector<2x8x32xf32>
    %276 = arith.addf %272, %275 : vector<2x8x32xf32>
    %277 = vector.shape_cast %6 : vector<1x32xf32> to vector<1x1x32xf32>
    %278 = vector.broadcast %277 : vector<1x1x32xf32> to vector<2x8x32xf32>
    %279 = arith.addf %276, %278 : vector<2x8x32xf32>
    %cst_25 = arith.constant 0.000000e+00 : f32
    %280 = vector.broadcast %cst_25 : f32 to vector<2x8x32xf32>
    %281 = arith.maximumf %279, %280 : vector<2x8x32xf32>
    %cst_26 = arith.constant dense<0.000000e+00> : vector<2x32xf32>
    %282 = vector.multi_reduction <add>, %281, %cst_26 [1] : vector<2x8x32xf32> to vector<2x32xf32>
    %cst_27 = arith.constant 8.000000e+00 : f32
    %283 = vector.broadcast %cst_27 : f32 to vector<2x32xf32>
    %284 = arith.divf %282, %283 : vector<2x32xf32>
    %cst_28 = arith.constant dense<0.000000e+00> : vector<2x32xf32>
    %285 = tpu.matmul %284, %12, %cst_28 {dimension_numbers = #tpu.dot_dimension_numbers<[1], [0], [0], [1], [0, 0, 1, 1], [], []>} : vector<2x32xf32>, vector<32x32xf32>, vector<2x32xf32> -> vector<2x32xf32>
    %286 = vector.broadcast %7 : vector<1x32xf32> to vector<2x32xf32>
    %287 = arith.addf %285, %286 : vector<2x32xf32>
    %cst_29 = arith.constant 0.000000e+00 : f32
    %288 = vector.broadcast %cst_29 : f32 to vector<2x32xf32>
    %289 = arith.maximumf %287, %288 : vector<2x32xf32>
    %cst_30 = arith.constant dense<0.000000e+00> : vector<2x32xf32>
    %290 = tpu.matmul %289, %13, %cst_30 {dimension_numbers = #tpu.dot_dimension_numbers<[1], [0], [0], [1], [0, 0, 1, 1], [], []>} : vector<2x32xf32>, vector<32x32xf32>, vector<2x32xf32> -> vector<2x32xf32>
    %291 = vector.broadcast %8 : vector<1x32xf32> to vector<2x32xf32>
    %292 = arith.addf %290, %291 : vector<2x32xf32>
    %cst_31 = arith.constant 0.000000e+00 : f32
    %293 = vector.broadcast %cst_31 : f32 to vector<2x32xf32>
    %294 = arith.maximumf %292, %293 : vector<2x32xf32>
    %295 = vector.broadcast %9 : vector<1x32xf32> to vector<2x32xf32>
    %296 = arith.mulf %294, %295 : vector<2x32xf32>
    %cst_32 = arith.constant dense<0.000000e+00> : vector<2xf32>
    %297 = vector.multi_reduction <add>, %296, %cst_32 [1] : vector<2x32xf32> to vector<2xf32>
    %298 = vector.shape_cast %297 : vector<2xf32> to vector<2x1xf32>
    %299 = vector.broadcast %10 : vector<1x1xf32> to vector<2x1xf32>
    %300 = arith.addf %298, %299 : vector<2x1xf32>
    %c0_33 = arith.constant 0 : index
    %c0_34 = arith.constant 0 : index
    %301 = vector.load %arg3[%c0_33, %c0_34] : memref<2x1xf32, #tpu.memory_space<vmem>>, vector<2x1xf32>
    tpu.vector_store %arg3[%c0_33, %c0_34], %300 {strides = array<i32>} : memref<2x1xf32, #tpu.memory_space<vmem>>, vector<2x1xf32>,
    return
  }
  func.func @transform_0(%arg0: i32) -> (i32, i32, i32) {
    %c0_i32 = arith.constant 0 : i32
    %c0_i32_0 = arith.constant 0 : i32
    %c0_i32_1 = arith.constant 0 : i32
    return %arg0, %c0_i32, %c0_i32_0 : i32, i32, i32
  }
  func.func @transform_1(%arg0: i32) -> (i32, i32) {
    %c0_i32 = arith.constant 0 : i32
    %c0_i32_0 = arith.constant 0 : i32
    %c0_i32_1 = arith.constant 0 : i32
    return %c0_i32, %c0_i32_0 : i32, i32
  }
  func.func @transform_2(%arg0: i32) -> (i32, i32) {
    %c0_i32 = arith.constant 0 : i32
    %c0_i32_0 = arith.constant 0 : i32
    return %arg0, %c0_i32 : i32, i32
  }
}

</mosaic_0001>

<llo_original>
// kernel: tpu_custom_call.1
$region0: #{tpu_custom_call.1}
  #allocation0 [shape = 'u32[]', space=smem, size = 0x4, offset = 0x4, fixed_abs, tag = 'smem constant byte address 0x4 - core index']
  #allocation1 [shape = 'u32[144,128]{1,0:T(1,128)}', space=vmem, size = 0x12000, scoped, tag = 'internal scratch']
  %s0 = inlined_call_operand.vmem [shape: f32[2,8,3], index: 0, kind: input, shape index: {}]
  %s1 = inlined_call_operand.hbm [shape: f32[112,128], index: 1, kind: input, shape index: {}]
  %s2 = inlined_call_operand.vmem [shape: f32[2,1], index: 2, kind: output, shape index: {}]
  %s3 = sld [smem:[#allocation0]]
  $region22: #{tpu_custom_call.1} parent=0
    _
  %s5 = ssub.s32 1, %s3
  %s6 = scalar_select 0, %s5, %s3
  $region1: #{tpu_custom_call.1} parent=0
    #allocation2 [shape = 'u8[57344]{0}', space=vmem, size = 0xe000, scoped, tag = 'input window, operand 1, single buffered']
    #allocation3 [shape = 's32[1]{0}', space=sflag, size = 0x4, scoped, tag = 'scoped memory for tpu_custom_call.1']
    %7 = vsyncpa [#allocation3], 0
    // Predicated region
    $region2: #{tpu_custom_call.1} parent=1 // pred_check
      _
    $region3: #{tpu_custom_call.1} parent=1 // pred_check_branch
      %9 = sbr.rel (0) target = $region5
    $region4: #{tpu_custom_call.1} parent=1 // pred_region
      _
    $region5: #{tpu_custom_call.1} parent=1 // pred_fallthru
      _
    // Predicated region
    $region6: #{tpu_custom_call.1} parent=1 // pred_check
      _
    $region7: #{tpu_custom_call.1} parent=1 // pred_check_branch
      %11 = sbr.rel (0) target = $region9
    $region8: #{tpu_custom_call.1} parent=1 // pred_region
      %s13 = ssub.s32 1792, 1792
      %14 = vsyncadd [#allocation3], %s13
      %s15 = sshll.u32 [#allocation2], 4
      %s16 = int_to_ptr.vmem [resolvable:$true] %s15
      %21 = dma.hbm_to_vmem [thread:$0]  %s1, 1792, %s16, [#allocation3], 128, 128, 8
    $region9: #{tpu_custom_call.1} parent=1 // pred_fallthru
      _
    // Predicated region
    $region10: #{tpu_custom_call.1} parent=1 // pred_check
      _
    $region11: #{tpu_custom_call.1} parent=1 // pred_check_branch
      %23 = sbr.rel (0) target = $region13
    $region12: #{tpu_custom_call.1} parent=1 // pred_region
      %24 = dma.done [#allocation3], 1792
    $region13: #{tpu_custom_call.1} parent=1 // pred_fallthru
      _
    %v25 = vld [vmem:[%s0] sm:$0xff]
    %v26 = vld [vmem:[%s0 + $0x8] sm:$0xff]
    %v27 = vld [vmem:[#allocation2] sm:$0x7]
    %v28 = vld [vmem:[#allocation2 + $0x3] sm:$0x7]
    %v29 = vld [vmem:[#allocation2 + $0x6] sm:$0x1]
    %v30 = vld [vmem:[#allocation2 + $0x7] sm:$0x1]
    %v31 = vld [vmem:[#allocation2 + $0x8] sm:$0x7]
    %v32 = vld [vmem:[#allocation2 + $0xb] sm:$0x1]
    %v33 = vld [vmem:[#allocation2 + $0xc] sm:$0x1]
    %v34 = vld [vmem:[#allocation2 + $0xd] sm:$0x1]
    %v35 = vld [vmem:[#allocation2 + $0xe] sm:$0x1]
    %v36 = vld [vmem:[#allocation2 + $0xf] sm:$0x1]
    %v37 = vld [vmem:[#allocation2 + $0x10] sm:$0xff]
    %v38 = vld [vmem:[#allocation2 + $0x18] sm:$0xff]
    %v39 = vld [vmem:[#allocation2 + $0x20] sm:$0xff]
    %v40 = vld [vmem:[#allocation2 + $0x28] sm:$0xff]
    %v41 = vld [vmem:[#allocation2 + $0x30] sm:$0xff]
    %v42 = vld [vmem:[#allocation2 + $0x38] sm:$0xff]
    %v43 = vld [vmem:[#allocation2 + $0x40] sm:$0xff]
    %v44 = vld [vmem:[#allocation2 + $0x48] sm:$0xff]
    %v45 = vld [vmem:[#allocation2 + $0x50] sm:$0xff]
    %v46 = vld [vmem:[#allocation2 + $0x58] sm:$0xff]
    %v47 = vld [vmem:[#allocation2 + $0x60] sm:$0xff]
    %v48 = vld [vmem:[#allocation2 + $0x68] sm:$0xff]
    %50 = vset.pattern.permute.xlu0 0
    %51 = vperm.xlu0 %50, %v25
    %v52 = vpop.permute.xlu0 %51
    %55 = vset.pattern.permute.xlu0 0
    %56 = vperm.xlu0 %55, %v26
    %v57 = vpop.permute.xlu0 %56
    %v59 = vlaneseq
    %v60 = vshrl.u32 %v59, 7
    %v61 = vsub.s32 0, %v60
    %v62 = vrot.slane %v27, %v61
    %v63 = vmul.f32 %v52, %v62
    %v64 = vmul.f32 %v57, %v62
    %65 = vset.pattern.permute.xlu0 1
    %66 = vperm.xlu0 %65, %v25
    %v67 = vpop.permute.xlu0 %66
    %69 = vset.pattern.permute.xlu0 1
    %70 = vperm.xlu0 %69, %v26
    %v71 = vpop.permute.xlu0 %70
    %v73 = vlaneseq
    %v74 = vshrl.u32 %v73, 7
    %v75 = vsub.s32 1, %v74
    %v76 = vrot.slane %v27, %v75
    %v77 = vmul.f32 %v67, %v76
    %v78 = vmul.f32 %v71, %v76
    %v79 = vadd.f32 %v63, %v77
    %v80 = vadd.f32 %v64, %v78
    %81 = vset.pattern.permute.xlu0 2
    %82 = vperm.xlu0 %81, %v25
    %v83 = vpop.permute.xlu0 %82
    %85 = vset.pattern.permute.xlu0 2
    %86 = vperm.xlu0 %85, %v26
    %v87 = vpop.permute.xlu0 %86
    %v89 = vlaneseq
    %v90 = vshrl.u32 %v89, 7
    %v91 = vsub.s32 2, %v90
    %v92 = vrot.slane %v27, %v91
    %v93 = vmul.f32 %v83, %v92
    %v94 = vmul.f32 %v87, %v92
    %v95 = vadd.f32 %v79, %v93
    %v96 = vadd.f32 %v80, %v94
    %v97 = vlaneseq
    %v98 = vshrl.u32 %v97, 7
    %v99 = vsub.s32 0, %v98
    %v100 = vrot.slane %v30, %v99
    %v101 = vadd.f32 %v95, %v100
    %v102 = vadd.f32 %v96, %v100
    %v103 = vlaneseq
    %v104 = vshrl.u32 %v103, 7
    %v105 = vsub.s32 0, %v104
    %v106 = vrot.slane %v28, %v105
    %v107 = vmul.f32 %v52, %v106
    %v108 = vmul.f32 %v57, %v106
    %v109 = vlaneseq
    %v110 = vshrl.u32 %v109, 7
    %v111 = vsub.s32 1, %v110
    %v112 = vrot.slane %v28, %v111
    %v113 = vmul.f32 %v67, %v112
    %v114 = vmul.f32 %v71, %v112
    %v115 = vadd.f32 %v107, %v113
    %v116 = vadd.f32 %v108, %v114
    %v117 = vlaneseq
    %v118 = vshrl.u32 %v117, 7
    %v119 = vsub.s32 2, %v118
    %v120 = vrot.slane %v28, %v119
    %v121 = vmul.f32 %v83, %v120
    %v122 = vmul.f32 %v87, %v120
    %v123 = vadd.f32 %v115, %v121
    %v124 = vadd.f32 %v116, %v122
    %v125 = vlaneseq
    %v126 = vshrl.u32 %v125, 7
    %v127 = vsub.s32 0, %v126
    %v128 = vrot.slane %v25, %v127
    %v129 = vlaneseq
    %v130 = vshrl.u32 %v129, 7
    %v131 = vsub.s32 0, %v130
    %v132 = vrot.slane %v26, %v131
    %v133 = vsub.f32 %v25, %v128
    %v134 = vsub.f32 %v26, %v132
    %v135 = vmul.f32 %v133, %v133
    %v136 = vmul.f32 %v134, %v134
    %139 = vrot.lane.b32.xlu0 %v135, 127
    %v140 = vpop.permute.xlu0 %139
    %141 = vrot.lane.b32.xlu0 %v136, 127
    %v142 = vpop.permute.xlu0 %141
    %v145 = vadd.f32 %v135, %v140
    %v146 = vadd.f32 %v136, %v142
    %147 = vrot.lane.b32.xlu0 %v135, 126
    %v148 = vpop.permute.xlu0 %147
    %149 = vrot.lane.b32.xlu0 %v136, 126
    %v150 = vpop.permute.xlu0 %149
    %v153 = vadd.f32 %v145, %v148
    %v154 = vadd.f32 %v146, %v150
    %v155 = vrsqrt.pop %v153
    %v156 = vmul.f32 %v153, %v155
    %vm157 = vcmp.eq.f32.partialorder %v153, inf
    %v158 = vsel %vm157, %v153, %v156
    %vm159 = vcmp.eq.f32.partialorder %v153, 0.0
    %v160 = vand.u32 %v153, 2147483648
    %v161 = vsel %vm159, %v160, %v158
    %v162 = vrsqrt.pop %v154
    %v163 = vmul.f32 %v154, %v162
    %vm164 = vcmp.eq.f32.partialorder %v154, inf
    %v165 = vsel %vm164, %v154, %v163
    %vm166 = vcmp.eq.f32.partialorder %v154, 0.0
    %v167 = vand.u32 %v154, 2147483648
    %v168 = vsel %vm166, %v167, %v165
    %v169 = vlaneseq
    %v170 = vshrl.u32 %v169, 7
    %v171 = vsub.s32 0, %v170
    %v172 = vrot.slane %v123, %v171
    %v173 = vlaneseq
    %v174 = vshrl.u32 %v173, 7
    %v175 = vsub.s32 0, %v174
    %v176 = vrot.slane %v124, %v175
    %v177 = vadd.f32 %v101, %v172
    %v178 = vadd.f32 %v102, %v176
    %180 = vset.pattern.permute.xlu0 0
    %181 = vperm.xlu0 %180, %v161
    %v182 = vpop.permute.xlu0 %181
    %185 = vset.pattern.permute.xlu0 0
    %186 = vperm.xlu0 %185, %v168
    %v187 = vpop.permute.xlu0 %186
    %v189 = vlaneseq
    %v190 = vshrl.u32 %v189, 7
    %v191 = vsub.s32 0, %v190
    %v192 = vrot.slane %v29, %v191
    %v193 = vmul.f32 %v182, %v192
    %v194 = vmul.f32 %v187, %v192
    %v195 = vadd.f32 %v177, %v193
    %v196 = vadd.f32 %v178, %v194
    %v197 = vmax.f32 %v195, 0.0
    %v198 = vmax.f32 %v196, 0.0
    %v199 = vadd.f32 %v197, 0.0
    %v200 = vadd.f32 %v198, 0.0
    %v201 = vlaneseq
    %v202 = vshrl.u32 %v201, 7
    %v203 = vsub.s32 1, %v202
    %v204 = vrot.slane %v25, %v203
    %v205 = vlaneseq
    %v206 = vshrl.u32 %v205, 7
    %v207 = vsub.s32 1, %v206
    %v208 = vrot.slane %v26, %v207
    %v209 = vsub.f32 %v25, %v204
    %v210 = vsub.f32 %v26, %v208
    %v211 = vmul.f32 %v209, %v209
    %v212 = vmul.f32 %v210, %v210
    %215 = vrot.lane.b32.xlu0 %v211, 127
    %v216 = vpop.permute.xlu0 %215
    %217 = vrot.lane.b32.xlu0 %v212, 127
    %v218 = vpop.permute.xlu0 %217
    %v221 = vadd.f32 %v211, %v216
    %v222 = vadd.f32 %v212, %v218
    %223 = vrot.lane.b32.xlu0 %v211, 126
    %v224 = vpop.permute.xlu0 %223
    %225 = vrot.lane.b32.xlu0 %v212, 126
    %v226 = vpop.permute.xlu0 %225
    %v229 = vadd.f32 %v221, %v224
    %v230 = vadd.f32 %v222, %v226
    %v231 = vrsqrt.pop %v229
    %v232 = vmul.f32 %v229, %v231
    %vm233 = vcmp.eq.f32.partialorder %v229, inf
    %v234 = vsel %vm233, %v229, %v232
    %vm235 = vcmp.eq.f32.partialorder %v229, 0.0
    %v236 = vand.u32 %v229, 2147483648
    %v237 = vsel %vm235, %v236, %v234
    %v238 = vrsqrt.pop %v230
    %v239 = vmul.f32 %v230, %v238
    %vm240 = vcmp.eq.f32.partialorder %v230, inf
    %v241 = vsel %vm240, %v230, %v239
    %vm242 = vcmp.eq.f32.partialorder %v230, 0.0
    %v243 = vand.u32 %v230, 2147483648
    %v244 = vsel %vm242, %v243, %v241
    %v245 = vlaneseq
    %v246 = vshrl.u32 %v245, 7
    %v247 = vsub.s32 1, %v246
    %v248 = vrot.slane %v123, %v247
    %v249 = vlaneseq
    %v250 = vshrl.u32 %v249, 7
    %v251 = vsub.s32 1, %v250
    %v252 = vrot.slane %v124, %v251
    %v253 = vadd.f32 %v101, %v248
    %v254 = vadd.f32 %v102, %v252
    %256 = vset.pattern.permute.xlu0 0
    %257 = vperm.xlu0 %256, %v237
    %v258 = vpop.permute.xlu0 %257
    %261 = vset.pattern.permute.xlu0 0
    %262 = vperm.xlu0 %261, %v244
    %v263 = vpop.permute.xlu0 %262
    %v265 = vmul.f32 %v258, %v192
    %v266 = vmul.f32 %v263, %v192
    %v267 = vadd.f32 %v253, %v265
    %v268 = vadd.f32 %v254, %v266
    %v269 = vmax.f32 %v267, 0.0
    %v270 = vmax.f32 %v268, 0.0
    %v271 = vadd.f32 %v199, %v269
    %v272 = vadd.f32 %v200, %v270
    %v273 = vlaneseq
    %v274 = vshrl.u32 %v273, 7
    %v275 = vsub.s32 2, %v274
    %v276 = vrot.slane %v25, %v275
    %v277 = vlaneseq
    %v278 = vshrl.u32 %v277, 7
    %v279 = vsub.s32 2, %v278
    %v280 = vrot.slane %v26, %v279
    %v281 = vsub.f32 %v25, %v276
    %v282 = vsub.f32 %v26, %v280
    %v283 = vmul.f32 %v281, %v281
    %v284 = vmul.f32 %v282, %v282
    %287 = vrot.lane.b32.xlu0 %v283, 127
    %v288 = vpop.permute.xlu0 %287
    %289 = vrot.lane.b32.xlu0 %v284, 127
    %v290 = vpop.permute.xlu0 %289
    %v293 = vadd.f32 %v283, %v288
    %v294 = vadd.f32 %v284, %v290
    %295 = vrot.lane.b32.xlu0 %v283, 126
    %v296 = vpop.permute.xlu0 %295
    %297 = vrot.lane.b32.xlu0 %v284, 126
    %v298 = vpop.permute.xlu0 %297
    %v301 = vadd.f32 %v293, %v296
    %v302 = vadd.f32 %v294, %v298
    %v303 = vrsqrt.pop %v301
    %v304 = vmul.f32 %v301, %v303
    %vm305 = vcmp.eq.f32.partialorder %v301, inf
    %v306 = vsel %vm305, %v301, %v304
    %vm307 = vcmp.eq.f32.partialorder %v301, 0.0
    %v308 = vand.u32 %v301, 2147483648
    %v309 = vsel %vm307, %v308, %v306
    %v310 = vrsqrt.pop %v302
    %v311 = vmul.f32 %v302, %v310
    %vm312 = vcmp.eq.f32.partialorder %v302, inf
    %v313 = vsel %vm312, %v302, %v311
    %vm314 = vcmp.eq.f32.partialorder %v302, 0.0
    %v315 = vand.u32 %v302, 2147483648
    %v316 = vsel %vm314, %v315, %v313
    %v317 = vlaneseq
    %v318 = vshrl.u32 %v317, 7
    %v319 = vsub.s32 2, %v318
    %v320 = vrot.slane %v123, %v319
    %v321 = vlaneseq
    %v322 = vshrl.u32 %v321, 7
    %v323 = vsub.s32 2, %v322
    %v324 = vrot.slane %v124, %v323
    %v325 = vadd.f32 %v101, %v320
    %v326 = vadd.f32 %v102, %v324
    %328 = vset.pattern.permute.xlu0 0
    %329 = vperm.xlu0 %328, %v309
    %v330 = vpop.permute.xlu0 %329
    %333 = vset.pattern.permute.xlu0 0
    %334 = vperm.xlu0 %333, %v316
    %v335 = vpop.permute.xlu0 %334
    %v337 = vmul.f32 %v330, %v192
    %v338 = vmul.f32 %v335, %v192
    %v339 = vadd.f32 %v325, %v337
    %v340 = vadd.f32 %v326, %v338
    %v341 = vmax.f32 %v339, 0.0
    %v342 = vmax.f32 %v340, 0.0
    %v343 = vadd.f32 %v271, %v341
    %v344 = vadd.f32 %v272, %v342
    %v345 = vlaneseq
    %v346 = vshrl.u32 %v345, 7
    %v347 = vsub.s32 3, %v346
    %v348 = vrot.slane %v25, %v347
    %v349 = vlaneseq
    %v350 = vshrl.u32 %v349, 7
    %v351 = vsub.s32 3, %v350
    %v352 = vrot.slane %v26, %v351
    %v353 = vsub.f32 %v25, %v348
    %v354 = vsub.f32 %v26, %v352
    %v355 = vmul.f32 %v353, %v353
    %v356 = vmul.f32 %v354, %v354
    %359 = vrot.lane.b32.xlu0 %v355, 127
    %v360 = vpop.permute.xlu0 %359
    %361 = vrot.lane.b32.xlu0 %v356, 127
    %v362 = vpop.permute.xlu0 %361
    %v365 = vadd.f32 %v355, %v360
    %v366 = vadd.f32 %v356, %v362
    %367 = vrot.lane.b32.xlu0 %v355, 126
    %v368 = vpop.permute.xlu0 %367
    %369 = vrot.lane.b32.xlu0 %v356, 126
    %v370 = vpop.permute.xlu0 %369
    %v373 = vadd.f32 %v365, %v368
    %v374 = vadd.f32 %v366, %v370
    %v375 = vrsqrt.pop %v373
    %v376 = vmul.f32 %v373, %v375
    %vm377 = vcmp.eq.f32.partialorder %v373, inf
    %v378 = vsel %vm377, %v373, %v376
    %vm379 = vcmp.eq.f32.partialorder %v373, 0.0
    %v380 = vand.u32 %v373, 2147483648
    %v381 = vsel %vm379, %v380, %v378
    %v382 = vrsqrt.pop %v374
    %v383 = vmul.f32 %v374, %v382
    %vm384 = vcmp.eq.f32.partialorder %v374, inf
    %v385 = vsel %vm384, %v374, %v383
    %vm386 = vcmp.eq.f32.partialorder %v374, 0.0
    %v387 = vand.u32 %v374, 2147483648
    %v388 = vsel %vm386, %v387, %v385
    %v389 = vlaneseq
    %v390 = vshrl.u32 %v389, 7
    %v391 = vsub.s32 3, %v390
    %v392 = vrot.slane %v123, %v391
    %v393 = vlaneseq
    %v394 = vshrl.u32 %v393, 7
    %v395 = vsub.s32 3, %v394
    %v396 = vrot.slane %v124, %v395
    %v397 = vadd.f32 %v101, %v392
    %v398 = vadd.f32 %v102, %v396
    %400 = vset.pattern.permute.xlu0 0
    %401 = vperm.xlu0 %400, %v381
    %v402 = vpop.permute.xlu0 %401
    %405 = vset.pattern.permute.xlu0 0
    %406 = vperm.xlu0 %405, %v388
    %v407 = vpop.permute.xlu0 %406
    %v409 = vmul.f32 %v402, %v192
    %v410 = vmul.f32 %v407, %v192
    %v411 = vadd.f32 %v397, %v409
    %v412 = vadd.f32 %v398, %v410
    %v413 = vmax.f32 %v411, 0.0
    %v414 = vmax.f32 %v412, 0.0
    %v415 = vadd.f32 %v343, %v413
    %v416 = vadd.f32 %v344, %v414
    %v417 = vlaneseq
    %v418 = vshrl.u32 %v417, 7
    %v419 = vsub.s32 4, %v418
    %v420 = vrot.slane %v25, %v419
    %v421 = vlaneseq
    %v422 = vshrl.u32 %v421, 7
    %v423 = vsub.s32 4, %v422
    %v424 = vrot.slane %v26, %v423
    %v425 = vsub.f32 %v25, %v420
    %v426 = vsub.f32 %v26, %v424
    %v427 = vmul.f32 %v425, %v425
    %v428 = vmul.f32 %v426, %v426
    %431 = vrot.lane.b32.xlu0 %v427, 127
    %v432 = vpop.permute.xlu0 %431
    %433 = vrot.lane.b32.xlu0 %v428, 127
    %v434 = vpop.permute.xlu0 %433
    %v437 = vadd.f32 %v427, %v432
    %v438 = vadd.f32 %v428, %v434
    %439 = vrot.lane.b32.xlu0 %v427, 126
    %v440 = vpop.permute.xlu0 %439
    %441 = vrot.lane.b32.xlu0 %v428, 126
    %v442 = vpop.permute.xlu0 %441
    %v445 = vadd.f32 %v437, %v440
    %v446 = vadd.f32 %v438, %v442
    %v447 = vrsqrt.pop %v445
    %v448 = vmul.f32 %v445, %v447
    %vm449 = vcmp.eq.f32.partialorder %v445, inf
    %v450 = vsel %vm449, %v445, %v448
    %vm451 = vcmp.eq.f32.partialorder %v445, 0.0
    %v452 = vand.u32 %v445, 2147483648
    %v453 = vsel %vm451, %v452, %v450
    %v454 = vrsqrt.pop %v446
    %v455 = vmul.f32 %v446, %v454
    %vm456 = vcmp.eq.f32.partialorder %v446, inf
    %v457 = vsel %vm456, %v446, %v455
    %vm458 = vcmp.eq.f32.partialorder %v446, 0.0
    %v459 = vand.u32 %v446, 2147483648
    %v460 = vsel %vm458, %v459, %v457
    %v461 = vlaneseq
    %v462 = vshrl.u32 %v461, 7
    %v463 = vsub.s32 4, %v462
    %v464 = vrot.slane %v123, %v463
    %v465 = vlaneseq
    %v466 = vshrl.u32 %v465, 7
    %v467 = vsub.s32 4, %v466
    %v468 = vrot.slane %v124, %v467
    %v469 = vadd.f32 %v101, %v464
    %v470 = vadd.f32 %v102, %v468
    %472 = vset.pattern.permute.xlu0 0
    %473 = vperm.xlu0 %472, %v453
    %v474 = vpop.permute.xlu0 %473
    %477 = vset.pattern.permute.xlu0 0
    %478 = vperm.xlu0 %477, %v460
    %v479 = vpop.permute.xlu0 %478
    %v481 = vmul.f32 %v474, %v192
    %v482 = vmul.f32 %v479, %v192
    %v483 = vadd.f32 %v469, %v481
    %v484 = vadd.f32 %v470, %v482
    %v485 = vmax.f32 %v483, 0.0
    %v486 = vmax.f32 %v484, 0.0
    %v487 = vadd.f32 %v415, %v485
    %v488 = vadd.f32 %v416, %v486
    %v489 = vlaneseq
    %v490 = vshrl.u32 %v489, 7
    %v491 = vsub.s32 5, %v490
    %v492 = vrot.slane %v25, %v491
    %v493 = vlaneseq
    %v494 = vshrl.u32 %v493, 7
    %v495 = vsub.s32 5, %v494
    %v496 = vrot.slane %v26, %v495
    %v497 = vsub.f32 %v25, %v492
    %v498 = vsub.f32 %v26, %v496
    %v499 = vmul.f32 %v497, %v497
    %v500 = vmul.f32 %v498, %v498
    %503 = vrot.lane.b32.xlu0 %v499, 127
    %v504 = vpop.permute.xlu0 %503
    %505 = vrot.lane.b32.xlu0 %v500, 127
    %v506 = vpop.permute.xlu0 %505
    %v509 = vadd.f32 %v499, %v504
    %v510 = vadd.f32 %v500, %v506
    %511 = vrot.lane.b32.xlu0 %v499, 126
    %v512 = vpop.permute.xlu0 %511
    %513 = vrot.lane.b32.xlu0 %v500, 126
    %v514 = vpop.permute.xlu0 %513
    %v517 = vadd.f32 %v509, %v512
    %v518 = vadd.f32 %v510, %v514
    %v519 = vrsqrt.pop %v517
    %v520 = vmul.f32 %v517, %v519
    %vm521 = vcmp.eq.f32.partialorder %v517, inf
    %v522 = vsel %vm521, %v517, %v520
    %vm523 = vcmp.eq.f32.partialorder %v517, 0.0
    %v524 = vand.u32 %v517, 2147483648
    %v525 = vsel %vm523, %v524, %v522
    %v526 = vrsqrt.pop %v518
    %v527 = vmul.f32 %v518, %v526
    %vm528 = vcmp.eq.f32.partialorder %v518, inf
    %v529 = vsel %vm528, %v518, %v527
    %vm530 = vcmp.eq.f32.partialorder %v518, 0.0
    %v531 = vand.u32 %v518, 2147483648
    %v532 = vsel %vm530, %v531, %v529
    %v533 = vlaneseq
    %v534 = vshrl.u32 %v533, 7
    %v535 = vsub.s32 5, %v534
    %v536 = vrot.slane %v123, %v535
    %v537 = vlaneseq
    %v538 = vshrl.u32 %v537, 7
    %v539 = vsub.s32 5, %v538
    %v540 = vrot.slane %v124, %v539
    %v541 = vadd.f32 %v101, %v536
    %v542 = vadd.f32 %v102, %v540
    %544 = vset.pattern.permute.xlu0 0
    %545 = vperm.xlu0 %544, %v525
    %v546 = vpop.permute.xlu0 %545
    %549 = vset.pattern.permute.xlu0 0
    %550 = vperm.xlu0 %549, %v532
    %v551 = vpop.permute.xlu0 %550
    %v553 = vmul.f32 %v546, %v192
    %v554 = vmul.f32 %v551, %v192
    %v555 = vadd.f32 %v541, %v553
    %v556 = vadd.f32 %v542, %v554
    %v557 = vmax.f32 %v555, 0.0
    %v558 = vmax.f32 %v556, 0.0
    %v559 = vadd.f32 %v487, %v557
    %v560 = vadd.f32 %v488, %v558
    %v561 = vlaneseq
    %v562 = vshrl.u32 %v561, 7
    %v563 = vsub.s32 6, %v562
    %v564 = vrot.slane %v25, %v563
    %v565 = vlaneseq
    %v566 = vshrl.u32 %v565, 7
    %v567 = vsub.s32 6, %v566
    %v568 = vrot.slane %v26, %v567
    %v569 = vsub.f32 %v25, %v564
    %v570 = vsub.f32 %v26, %v568
    %v571 = vmul.f32 %v569, %v569
    %v572 = vmul.f32 %v570, %v570
    %575 = vrot.lane.b32.xlu0 %v571, 127
    %v576 = vpop.permute.xlu0 %575
    %577 = vrot.lane.b32.xlu0 %v572, 127
    %v578 = vpop.permute.xlu0 %577
    %v581 = vadd.f32 %v571, %v576
    %v582 = vadd.f32 %v572, %v578
    %583 = vrot.lane.b32.xlu0 %v571, 126
    %v584 = vpop.permute.xlu0 %583
    %585 = vrot.lane.b32.xlu0 %v572, 126
    %v586 = vpop.permute.xlu0 %585
    %v589 = vadd.f32 %v581, %v584
    %v590 = vadd.f32 %v582, %v586
    %v591 = vrsqrt.pop %v589
    %v592 = vmul.f32 %v589, %v591
    %vm593 = vcmp.eq.f32.partialorder %v589, inf
    %v594 = vsel %vm593, %v589, %v592
    %vm595 = vcmp.eq.f32.partialorder %v589, 0.0
    %v596 = vand.u32 %v589, 2147483648
    %v597 = vsel %vm595, %v596, %v594
    %v598 = vrsqrt.pop %v590
    %v599 = vmul.f32 %v590, %v598
    %vm600 = vcmp.eq.f32.partialorder %v590, inf
    %v601 = vsel %vm600, %v590, %v599
    %vm602 = vcmp.eq.f32.partialorder %v590, 0.0
    %v603 = vand.u32 %v590, 2147483648
    %v604 = vsel %vm602, %v603, %v601
    %v605 = vlaneseq
    %v606 = vshrl.u32 %v605, 7
    %v607 = vsub.s32 6, %v606
    %v608 = vrot.slane %v123, %v607
    %v609 = vlaneseq
    %v610 = vshrl.u32 %v609, 7
    %v611 = vsub.s32 6, %v610
    %v612 = vrot.slane %v124, %v611
    %v613 = vadd.f32 %v101, %v608
    %v614 = vadd.f32 %v102, %v612
    %616 = vset.pattern.permute.xlu0 0
    %617 = vperm.xlu0 %616, %v597
    %v618 = vpop.permute.xlu0 %617
    %621 = vset.pattern.permute.xlu0 0
    %622 = vperm.xlu0 %621, %v604
    %v623 = vpop.permute.xlu0 %622
    %v625 = vmul.f32 %v618, %v192
    %v626 = vmul.f32 %v623, %v192
    %v627 = vadd.f32 %v613, %v625
    %v628 = vadd.f32 %v614, %v626
    %v629 = vmax.f32 %v627, 0.0
    %v630 = vmax.f32 %v628, 0.0
    %v631 = vadd.f32 %v559, %v629
    %v632 = vadd.f32 %v560, %v630
    %v633 = vlaneseq
    %v634 = vshrl.u32 %v633, 7
    %v635 = vsub.s32 7, %v634
    %v636 = vrot.slane %v25, %v635
    %v637 = vlaneseq
    %v638 = vshrl.u32 %v637, 7
    %v639 = vsub.s32 7, %v638
    %v640 = vrot.slane %v26, %v639
    %v641 = vsub.f32 %v25, %v636
    %v642 = vsub.f32 %v26, %v640
    %v643 = vmul.f32 %v641, %v641
    %v644 = vmul.f32 %v642, %v642
    %647 = vrot.lane.b32.xlu0 %v643, 127
    %v648 = vpop.permute.xlu0 %647
    %649 = vrot.lane.b32.xlu0 %v644, 127
    %v650 = vpop.permute.xlu0 %649
    %v653 = vadd.f32 %v643, %v648
    %v654 = vadd.f32 %v644, %v650
    %655 = vrot.lane.b32.xlu0 %v643, 126
    %v656 = vpop.permute.xlu0 %655
    %657 = vrot.lane.b32.xlu0 %v644, 126
    %v658 = vpop.permute.xlu0 %657
    %v661 = vadd.f32 %v653, %v656
    %v662 = vadd.f32 %v654, %v658
    %v663 = vrsqrt.pop %v661
    %v664 = vmul.f32 %v661, %v663
    %vm665 = vcmp.eq.f32.partialorder %v661, inf
    %v666 = vsel %vm665, %v661, %v664
    %vm667 = vcmp.eq.f32.partialorder %v661, 0.0
    %v668 = vand.u32 %v661, 2147483648
    %v669 = vsel %vm667, %v668, %v666
    %v670 = vrsqrt.pop %v662
    %v671 = vmul.f32 %v662, %v670
    %vm672 = vcmp.eq.f32.partialorder %v662, inf
    %v673 = vsel %vm672, %v662, %v671
    %vm674 = vcmp.eq.f32.partialorder %v662, 0.0
    %v675 = vand.u32 %v662, 2147483648
    %v676 = vsel %vm674, %v675, %v673
    %v677 = vlaneseq
    %v678 = vshrl.u32 %v677, 7
    %v679 = vsub.s32 7, %v678
    %v680 = vrot.slane %v123, %v679
    %v681 = vlaneseq
    %v682 = vshrl.u32 %v681, 7
    %v683 = vsub.s32 7, %v682
    %v684 = vrot.slane %v124, %v683
    %v685 = vadd.f32 %v101, %v680
    %v686 = vadd.f32 %v102, %v684
    %688 = vset.pattern.permute.xlu0 0
    %689 = vperm.xlu0 %688, %v669
    %v690 = vpop.permute.xlu0 %689
    %693 = vset.pattern.permute.xlu0 0
    %694 = vperm.xlu0 %693, %v676
    %v695 = vpop.permute.xlu0 %694
    %v697 = vmul.f32 %v690, %v192
    %v698 = vmul.f32 %v695, %v192
    %v699 = vadd.f32 %v685, %v697
    %v700 = vadd.f32 %v686, %v698
    %v701 = vmax.f32 %v699, 0.0
    %v702 = vmax.f32 %v700, 0.0
    %v703 = vadd.f32 %v631, %v701
    %v704 = vadd.f32 %v632, %v702
    %v705 = vlaneseq
    %v706 = vshrl.u32 %v705, 7
    %v707 = vsub.s32 0, %v706
    %v708 = vrot.slane %v31, %v707
    %v709 = vmul.f32 %v52, %v708
    %v710 = vmul.f32 %v57, %v708
    %v711 = vlaneseq
    %v712 = vshrl.u32 %v711, 7
    %v713 = vsub.s32 1, %v712
    %v714 = vrot.slane %v31, %v713
    %v715 = vmul.f32 %v67, %v714
    %v716 = vmul.f32 %v71, %v714
    %v717 = vadd.f32 %v709, %v715
    %v718 = vadd.f32 %v710, %v716
    %v719 = vlaneseq
    %v720 = vshrl.u32 %v719, 7
    %v721 = vsub.s32 2, %v720
    %v722 = vrot.slane %v31, %v721
    %v723 = vmul.f32 %v83, %v722
    %v724 = vmul.f32 %v87, %v722
    %v725 = vadd.f32 %v717, %v723
    %v726 = vadd.f32 %v718, %v724
    %vm727 = vcmask 261120
    %v729 = vsel %vm727, %v703, 0
    %v732 = vsel %vm727, %v704, 0
    %734 = vmatprep.subr.mxu0 0.0
    %735 = vmatpush1.msra.mxu0 0.0
    %736 = vmatprep.subr.mxu0 0.0
    %737 = vmatpush1.msra.mxu0 0.0
    %738 = vmatprep.subr.mxu0 0.0
    %739 = vmatpush1.msra.mxu0 0.0
    %740 = vmatprep.subr.mxu0 0.0
    %741 = vmatpush1.msra.mxu0 0.0
    %742 = vmatprep.subr.mxu0 0.0
    %743 = vmatpush1.msra.mxu0 0.0
    %744 = vmatprep.subr.mxu0 0.0
    %745 = vmatpush1.msra.mxu0 0.0
    %746 = vmatprep.subr.mxu0 0.0
    %747 = vmatpush1.msra.mxu0 0.0
    %748 = vmatprep.subr.mxu0 0.0
    %749 = vmatpush1.msra.mxu0 0.0
    %750 = vmatprep.subr.mxu0 0.0
    %751 = vmatpush1.msra.mxu0 0.0
    %752 = vmatprep.subr.mxu0 0.0
    %753 = vmatpush1.msra.mxu0 0.0
    %754 = vmatprep.subr.mxu0 0.0
    %755 = vmatpush1.msra.mxu0 0.0
    %756 = vmatprep.subr.mxu0 0.0
    %757 = vmatpush1.msra.mxu0 0.0
    %758 = vmatprep.subr.mxu0 0.0
    %759 = vmatpush1.msra.mxu0 %v40
    %760 = vmatprep.subr.mxu0 0.0
    %761 = vmatpush1.msra.mxu0 %v39
    %762 = vmatprep.subr.mxu0 0.0
    %763 = vmatpush1.msra.mxu0 %v38
    %764 = vmatprep.subr.mxu0 0.0
    %765 = vmatpush1.msra.mxu0 %v37
    %766 = vmatprep.subr.mxu0 0.0
    %767 = vmatpush2.msra.mxu0 0.0
    %768 = vmatprep.subr.mxu0 0.0
    %769 = vmatpush2.msra.mxu0 0.0
    %770 = vmatprep.subr.mxu0 0.0
    %771 = vmatpush2.msra.mxu0 0.0
    %772 = vmatprep.subr.mxu0 0.0
    %773 = vmatpush2.msra.mxu0 0.0
    %774 = vmatprep.subr.mxu0 0.0
    %775 = vmatpush2.msra.mxu0 0.0
    %776 = vmatprep.subr.mxu0 0.0
    %777 = vmatpush2.msra.mxu0 0.0
    %778 = vmatprep.subr.mxu0 0.0
    %779 = vmatpush2.msra.mxu0 0.0
    %780 = vmatprep.subr.mxu0 0.0
    %781 = vmatpush2.msra.mxu0 0.0
    %782 = vmatprep.subr.mxu0 0.0
    %783 = vmatpush2.msra.mxu0 0.0
    %784 = vmatprep.subr.mxu0 0.0
    %785 = vmatpush2.msra.mxu0 0.0
    %786 = vmatprep.subr.mxu0 0.0
    %787 = vmatpush2.msra.mxu0 0.0
    %788 = vmatprep.subr.mxu0 0.0
    %789 = vmatpush2.msra.mxu0 0.0
    %790 = vmatprep.subr.mxu0 0.0
    %791 = vmatpush2.msra.mxu0 0.0
    %792 = vmatprep.subr.mxu0 0.0
    %793 = vmatpush2.msra.mxu0 0.0
    %794 = vmatprep.subr.mxu0 0.0
    %795 = vmatpush2.msra.mxu0 0.0
    %796 = vmatprep.subr.mxu0 0.0
    %797 = vmatpush2.msra.mxu0 0.0
    %798 = vmatprep.mubr.f32.mxu0 0.0
    %799 = vmatmul.mubr.f32.gmra.mxu0 %v729
    %v800 = vpop.f32.mrf.mxu0
    %v801 = vadd.f32 0.0, %v800
    %v802 = vpop.f32.mrf.mxu0
    %803 = vmatprep.mubr.f32.mxu0 0.0
    %804 = vmatmul.mubr.f32.gmra.mxu0 %v732
    %v805 = vpop.f32.mrf.mxu0
    %v806 = vadd.f32 0.0, %v805
    %v807 = vpop.f32.mrf.mxu0
    %808 = vdwg.mxu0
    %v809 = vadd.f32 %v725, %v801
    %v810 = vadd.f32 %v726, %v806
    %v811 = vlaneseq
    %v812 = vshrl.u32 %v811, 7
    %v813 = vsub.s32 0, %v812
    %v814 = vrot.slane %v32, %v813
    %v815 = vadd.f32 %v809, %v814
    %v816 = vadd.f32 %v810, %v814
    %v817 = vmax.f32 %v815, 0.0
    %v818 = vmax.f32 %v816, 0.0
    %v819 = vsel %vm727, %v817, 0.0
    %v820 = vrot.slane %v819, 4
    %v821 = vadd.f32 %v819, %v820
    %v822 = vrot.slane %v821, 2
    %v823 = vadd.f32 %v821, %v822
    %v824 = vrot.slane %v823, 1
    %v825 = vadd.f32 %v823, %v824
    %v826 = vsel %vm727, %v818, 0.0
    %v827 = vrot.slane %v826, 4
    %v828 = vadd.f32 %v826, %v827
    %v829 = vrot.slane %v828, 2
    %v830 = vadd.f32 %v828, %v829
    %v831 = vrot.slane %v830, 1
    %v832 = vadd.f32 %v830, %v831
    %v833 = vrcp.pop 8.0
    %v834 = vmul.f32 %v825, %v833
    %v835 = vmul.f32 %v832, %v833
    %v836 = vlaneseq
    %v837 = vshrl.u32 %v836, 7
    %v838 = vsub.s32 0, %v837
    %v839 = vrot.slane %v33, %v838
    %vm842 = vcmask 1041409
    %v843 = vsel %vm842, %v835, %v834
    %v844 = vsel %vm727, %v843, 0
    %846 = vmatprep.subr.mxu0 0.0
    %847 = vmatpush1.msra.mxu0 0.0
    %848 = vmatprep.subr.mxu0 0.0
    %849 = vmatpush1.msra.mxu0 0.0
    %850 = vmatprep.subr.mxu0 0.0
    %851 = vmatpush1.msra.mxu0 0.0
    %852 = vmatprep.subr.mxu0 0.0
    %853 = vmatpush1.msra.mxu0 0.0
    %854 = vmatprep.subr.mxu0 0.0
    %855 = vmatpush1.msra.mxu0 0.0
    %856 = vmatprep.subr.mxu0 0.0
    %857 = vmatpush1.msra.mxu0 0.0
    %858 = vmatprep.subr.mxu0 0.0
    %859 = vmatpush1.msra.mxu0 0.0
    %860 = vmatprep.subr.mxu0 0.0
    %861 = vmatpush1.msra.mxu0 0.0
    %862 = vmatprep.subr.mxu0 0.0
    %863 = vmatpush1.msra.mxu0 0.0
    %864 = vmatprep.subr.mxu0 0.0
    %865 = vmatpush1.msra.mxu0 0.0
    %866 = vmatprep.subr.mxu0 0.0
    %867 = vmatpush1.msra.mxu0 0.0
    %868 = vmatprep.subr.mxu0 0.0
    %869 = vmatpush1.msra.mxu0 0.0
    %870 = vmatprep.subr.mxu0 0.0
    %871 = vmatpush1.msra.mxu0 %v44
    %872 = vmatprep.subr.mxu0 0.0
    %873 = vmatpush1.msra.mxu0 %v43
    %874 = vmatprep.subr.mxu0 0.0
    %875 = vmatpush1.msra.mxu0 %v42
    %876 = vmatprep.subr.mxu0 0.0
    %877 = vmatpush1.msra.mxu0 %v41
    %878 = vmatprep.subr.mxu0 0.0
    %879 = vmatpush2.msra.mxu0 0.0
    %880 = vmatprep.subr.mxu0 0.0
    %881 = vmatpush2.msra.mxu0 0.0
    %882 = vmatprep.subr.mxu0 0.0
    %883 = vmatpush2.msra.mxu0 0.0
    %884 = vmatprep.subr.mxu0 0.0
    %885 = vmatpush2.msra.mxu0 0.0
    %886 = vmatprep.subr.mxu0 0.0
    %887 = vmatpush2.msra.mxu0 0.0
    %888 = vmatprep.subr.mxu0 0.0
    %889 = vmatpush2.msra.mxu0 0.0
    %890 = vmatprep.subr.mxu0 0.0
    %891 = vmatpush2.msra.mxu0 0.0
    %892 = vmatprep.subr.mxu0 0.0
    %893 = vmatpush2.msra.mxu0 0.0
    %894 = vmatprep.subr.mxu0 0.0
    %895 = vmatpush2.msra.mxu0 0.0
    %896 = vmatprep.subr.mxu0 0.0
    %897 = vmatpush2.msra.mxu0 0.0
    %898 = vmatprep.subr.mxu0 0.0
    %899 = vmatpush2.msra.mxu0 0.0
    %900 = vmatprep.subr.mxu0 0.0
    %901 = vmatpush2.msra.mxu0 0.0
    %902 = vmatprep.subr.mxu0 0.0
    %903 = vmatpush2.msra.mxu0 0.0
    %904 = vmatprep.subr.mxu0 0.0
    %905 = vmatpush2.msra.mxu0 0.0
    %906 = vmatprep.subr.mxu0 0.0
    %907 = vmatpush2.msra.mxu0 0.0
    %908 = vmatprep.subr.mxu0 0.0
    %909 = vmatpush2.msra.mxu0 0.0
    %910 = vmatprep.mubr.f32.mxu0 0.0
    %911 = vmatmul.mubr.f32.gmra.mxu0 %v844
    %v912 = vpop.f32.mrf.mxu0
    %v913 = vadd.f32 %v839, %v912
    %v914 = vpop.f32.mrf.mxu0
    %915 = vdwg.mxu0
    %v916 = vmax.f32 %v913, 0.0
    %v917 = vlaneseq
    %v918 = vshrl.u32 %v917, 7
    %v919 = vsub.s32 0, %v918
    %v920 = vrot.slane %v34, %v919
    %v922 = vsel %vm727, %v916, 0
    %924 = vmatprep.subr.mxu0 0.0
    %925 = vmatpush1.msra.mxu0 0.0
    %926 = vmatprep.subr.mxu0 0.0
    %927 = vmatpush1.msra.mxu0 0.0
    %928 = vmatprep.subr.mxu0 0.0
    %929 = vmatpush1.msra.mxu0 0.0
    %930 = vmatprep.subr.mxu0 0.0
    %931 = vmatpush1.msra.mxu0 0.0
    %932 = vmatprep.subr.mxu0 0.0
    %933 = vmatpush1.msra.mxu0 0.0
    %934 = vmatprep.subr.mxu0 0.0
    %935 = vmatpush1.msra.mxu0 0.0
    %936 = vmatprep.subr.mxu0 0.0
    %937 = vmatpush1.msra.mxu0 0.0
    %938 = vmatprep.subr.mxu0 0.0
    %939 = vmatpush1.msra.mxu0 0.0
    %940 = vmatprep.subr.mxu0 0.0
    %941 = vmatpush1.msra.mxu0 0.0
    %942 = vmatprep.subr.mxu0 0.0
    %943 = vmatpush1.msra.mxu0 0.0
    %944 = vmatprep.subr.mxu0 0.0
    %945 = vmatpush1.msra.mxu0 0.0
    %946 = vmatprep.subr.mxu0 0.0
    %947 = vmatpush1.msra.mxu0 0.0
    %948 = vmatprep.subr.mxu0 0.0
    %949 = vmatpush1.msra.mxu0 %v48
    %950 = vmatprep.subr.mxu0 0.0
    %951 = vmatpush1.msra.mxu0 %v47
    %952 = vmatprep.subr.mxu0 0.0
    %953 = vmatpush1.msra.mxu0 %v46
    %954 = vmatprep.subr.mxu0 0.0
    %955 = vmatpush1.msra.mxu0 %v45
    %956 = vmatprep.subr.mxu0 0.0
    %957 = vmatpush2.msra.mxu0 0.0
    %958 = vmatprep.subr.mxu0 0.0
    %959 = vmatpush2.msra.mxu0 0.0
    %960 = vmatprep.subr.mxu0 0.0
    %961 = vmatpush2.msra.mxu0 0.0
    %962 = vmatprep.subr.mxu0 0.0
    %963 = vmatpush2.msra.mxu0 0.0
    %964 = vmatprep.subr.mxu0 0.0
    %965 = vmatpush2.msra.mxu0 0.0
    %966 = vmatprep.subr.mxu0 0.0
    %967 = vmatpush2.msra.mxu0 0.0
    %968 = vmatprep.subr.mxu0 0.0
    %969 = vmatpush2.msra.mxu0 0.0
    %970 = vmatprep.subr.mxu0 0.0
    %971 = vmatpush2.msra.mxu0 0.0
    %972 = vmatprep.subr.mxu0 0.0
    %973 = vmatpush2.msra.mxu0 0.0
    %974 = vmatprep.subr.mxu0 0.0
    %975 = vmatpush2.msra.mxu0 0.0
    %976 = vmatprep.subr.mxu0 0.0
    %977 = vmatpush2.msra.mxu0 0.0
    %978 = vmatprep.subr.mxu0 0.0
    %979 = vmatpush2.msra.mxu0 0.0
    %980 = vmatprep.subr.mxu0 0.0
    %981 = vmatpush2.msra.mxu0 0.0
    %982 = vmatprep.subr.mxu0 0.0
    %983 = vmatpush2.msra.mxu0 0.0
    %984 = vmatprep.subr.mxu0 0.0
    %985 = vmatpush2.msra.mxu0 0.0
    %986 = vmatprep.subr.mxu0 0.0
    %987 = vmatpush2.msra.mxu0 0.0
    %988 = vmatprep.mubr.f32.mxu0 0.0
    %989 = vmatmul.mubr.f32.gmra.mxu0 %v922
    %v990 = vpop.f32.mrf.mxu0
    %v991 = vadd.f32 %v920, %v990
    %v992 = vpop.f32.mrf.mxu0
    %993 = vdwg.mxu0
    %v994 = vmax.f32 %v991, 0.0
    %v995 = vlaneseq
    %v996 = vshrl.u32 %v995, 7
    %v997 = vsub.s32 0, %v996
    %v998 = vrot.slane %v35, %v997
    %v999 = vmul.f32 %v994, %v998
    %vm1000 = vcmask 254976
    %v1001 = vsel %vm1000, %v999, 0.0
    %1002 = vadd.xlane.f32.xlu0 %v1001
    %v1003 = vpop.xlane.xlu0 %1002
    %v1004 = vlaneseq
    %v1005 = vshrl.u32 %v1004, 7
    %v1006 = vsub.s32 0, %v1005
    %v1007 = vrot.slane %v36, %v1006
    %v1008 = vadd.f32 %v1003, %v1007
    %vm1009 = vcmask 1024
    %1010 = vst.msk [vmem:[%s2] sm:$0x3] %vm1009, %v1008
    // Predicated region
    $region14: #{tpu_custom_call.1} parent=1 // pred_check
      _
    $region15: #{tpu_custom_call.1} parent=1 // pred_check_branch
      %1012 = sbr.rel (0) target = $region17
    $region16: #{tpu_custom_call.1} parent=1 // pred_region
      _
    $region17: #{tpu_custom_call.1} parent=1 // pred_fallthru
      _
    // Predicated region
    $region18: #{tpu_custom_call.1} parent=1 // pred_check
      _
    $region19: #{tpu_custom_call.1} parent=1 // pred_check_branch
      %1014 = sbr.rel (0) target = $region21
    $region20: #{tpu_custom_call.1} parent=1 // pred_region
      _
    $region21: #{tpu_custom_call.1} parent=1 // pred_fallthru
      _
    %1015 = vsyncpa [#allocation3], 1

</llo_original>
